<compile_context>
chip_gen: v7x
topology: tpu7x:2x2x1
jax: 0.10.0
libtpu: 0.0.40
codegen_flags: <defaults>
</compile_context>

<pallas_src>
import math

import jax
import jax.numpy as jnp
import numpy as np
from jax.experimental import pallas as pl
from jax.experimental.pallas import tpu as pltpu

BN_EPS = 1e-5  # PyTorch BatchNorm1d default


# ------------------------------ fused GC_Block kernel ------------------------------

def _gc_block_kernel(x_ref,
                     abig1_ref, wbig1_ref, s1_ref, t1_ref,
                     abig2_ref, wbig2_ref, s2_ref, t2_ref,
                     o_ref):
    """One batch block per grid step; all operands live fully in VMEM.

    x_ref   : (TB*F, N)      flattened batch block
    abig*   : (N, N)         kron(att, I_dim)   -- graph mixing over node axis
    wbig*   : (TB*F, TB*F)   kron(I_TB, weight) -- block-diag feature mixing
    s*, t*  : (TB*F, N)      fused eval-mode BN scale / shift (GC bias folded in)
    o_ref   : (TB*F, N)
    """
    x = x_ref[...]

    # ---- gc1: graph mixing then block-diagonal feature mixing ----
    sup = jnp.dot(x, abig1_ref[...], preferred_element_type=jnp.float32)
    y = jnp.dot(wbig1_ref[...], sup, preferred_element_type=jnp.float32)
    # ---- bn1 (eval, fused scale/shift incl. gc bias) + relu; dropout = id ----
    y = jnp.maximum(y * s1_ref[...] + t1_ref[...], 0.0)

    # ---- gc2 ----
    sup = jnp.dot(y, abig2_ref[...], preferred_element_type=jnp.float32)
    y = jnp.dot(wbig2_ref[...], sup, preferred_element_type=jnp.float32)
    # ---- bn2 (eval) + relu ----
    y = jnp.maximum(y * s2_ref[...] + t2_ref[...], 0.0)

    # ---- residual ----
    o_ref[...] = (y + x).astype(o_ref.dtype)


def _broadcast2d(shape):
    """Whole-array 2-D block, identical at every grid step (no re-fetch)."""
    return pl.BlockSpec(shape, lambda i: (0, 0))


def gc_block_forward(x, kp, batch_blocks=1):
    """x: (B, F, N) float32 -> (B, F, N) float32 (eval-mode GC_Block).

    batch_blocks=1 : single grid step for the whole batch (best at tiny B).
    batch_blocks=2 : two balanced blocks (megacore sharding on v7x).
    """
    b, f, n = x.shape
    assert b % batch_blocks == 0
    tb = b // batch_blocks
    rows = tb * f
    x2d = x.reshape(b * f, n)                      # contiguous, free reshape

    out2d = pl.pallas_call(
        _gc_block_kernel,
        out_shape=jax.ShapeDtypeStruct((b * f, n), jnp.float32),
        grid=(batch_blocks,),
        in_specs=[
            pl.BlockSpec((rows, n), lambda i: (i, 0)),
            _broadcast2d((n, n)), _broadcast2d((rows, rows)),
            _broadcast2d((rows, n)), _broadcast2d((rows, n)),
            _broadcast2d((n, n)), _broadcast2d((rows, rows)),
            _broadcast2d((rows, n)), _broadcast2d((rows, n)),
        ],
        out_specs=pl.BlockSpec((rows, n), lambda i: (i, 0)),
        compiler_params=pltpu.CompilerParams(
            dimension_semantics=("parallel",)),    # batch blocks are independent
    )(x2d,
      kp["abig1"], kp["wbig1"], kp["s1"], kp["t1"],
      kp["abig2"], kp["wbig2"], kp["s2"], kp["t2"])
    return out2d.reshape(b, f, n)


# ------------------------------ parameters -----------------------------------------

def init_raw_params(key, in_features, node_n, dim, adj):
    """Torch-style raw parameters for the two GraphConvolutions + two BatchNorms."""
    f, n = in_features, node_n
    node = node_n // dim
    stdv = 1.0 / math.sqrt(node)        # reset_parameters: 1/sqrt(att.size(1))
    ks = jax.random.split(key, 2)
    p = {}
    for li in (1, 2):
        k0, k1, k2, k3 = jax.random.split(ks[li - 1], 4)
        p[f"weight{li}"] = jax.random.uniform(
            k0, (f, f), minval=-stdv, maxval=stdv, dtype=jnp.float32)
        q = jax.random.uniform(
            k1, (node, node), minval=0.01, maxval=0.24, dtype=jnp.float32)
        p[f"att{li}"] = adj + q                                    # att = Ap + Q
        p[f"gc_bias{li}"] = jax.random.uniform(
            k2, (n,), minval=-stdv, maxval=stdv, dtype=jnp.float32)
        # init_weight(): BN gamma = 1, beta = 0.  Fresh running stats would be
        # identity in eval mode; use non-trivial running stats so the fused
        # scale/shift path is actually exercised by the numerical check.
        p[f"bn_gamma{li}"] = jnp.ones((f * n,), jnp.float32)
        p[f"bn_beta{li}"] = jnp.zeros((f * n,), jnp.float32)
        km, kv = jax.random.split(k3)
        p[f"bn_mean{li}"] = 0.05 * jax.random.normal(km, (f * n,), dtype=jnp.float32)
        p[f"bn_var{li}"] = jax.random.uniform(
            kv, (f * n,), minval=0.5, maxval=1.5, dtype=jnp.float32)
    return p


def pack_kernel_params(raw, in_features, node_n, dim, batch_per_block):
    """One-time pre-packing.

    * abig  = kron(att, I_dim)        -> graph mixing as a single right matmul
    * wbig  = kron(I_TB, weight)      -> batched feature mixing as one block-diag dot
    * s, t  = fused eval-mode BN scale/shift, with the GC bias folded into t,
              tiled to the (TB*F, N) block layout.
    """
    f, n = in_features, node_n
    tb = batch_per_block
    eye_dim = jnp.eye(dim, dtype=jnp.float32)
    eye_tb = jnp.eye(tb, dtype=jnp.float32)
    kp = {}
    for li in (1, 2):
        kp[f"abig{li}"] = jnp.kron(raw[f"att{li}"], eye_dim)       # (n, n)
        kp[f"wbig{li}"] = jnp.kron(eye_tb, raw[f"weight{li}"])     # (tb*f, tb*f)
        scale = (raw[f"bn_gamma{li}"]
                 / jnp.sqrt(raw[f"bn_var{li}"] + BN_EPS)).reshape(f, n)
        shift = (raw[f"bn_beta{li}"].reshape(f, n)
                 - raw[f"bn_mean{li}"].reshape(f, n) * scale)
        # fold GC bias (broadcast over F) into the BN shift: BN(core + bias)
        shift = shift + scale * raw[f"gc_bias{li}"].reshape(1, n)
        kp[f"s{li}"] = jnp.tile(scale, (tb, 1))                    # (tb*f, n)
        kp[f"t{li}"] = jnp.tile(shift, (tb, 1))                    # (tb*f, n)
    return kp


# ------------------------------ pure-JAX reference ----------------------------------

def _graph_conv_ref(x, weight, att, bias, node, dim):
    b, f, n = x.shape
    xr = x.reshape(b, f, node, dim).transpose(0, 1, 3, 2)          # (b,f,dim,node)
    support = jnp.matmul(xr, att)                                  # (b,f,dim,node)
    support = support.transpose(0, 1, 3, 2).reshape(b, f, n)       # (b,f,n)
    out = jnp.einsum("ij,bjn->bin", weight, support)
    return out + bias                                              # bias: (n,)


def _bn_eval_ref(y2d, gamma, beta, mean, var):
    return (y2d - mean) / jnp.sqrt(var + BN_EPS) * gamma + beta


def gc_block_reference(x, raw, node_n, dim):
    b, f, n = x.shape
    node = node_n // dim
    y = x
    for li in (1, 2):
        y = _graph_conv_ref(y, raw[f"weight{li}"], raw[f"att{li}"],
                            raw[f"gc_bias{li}"], node, dim)
        y2d = _bn_eval_ref(y.reshape(b, -1), raw[f"bn_gamma{li}"],
                           raw[f"bn_beta{li}"], raw[f"bn_mean{li}"],
                           raw[f"bn_var{li}"])
        y = jnp.maximum(y2d.reshape(b, f, n), 0.0)
        # dropout: identity (eval mode)
    return y + x


# ------------------------------------ main ------------------------------------------

if __name__ == "__main__":
    in_features, node_n, dim, batch = 16, 48, 3, 2
    node = node_n // dim
    batch_blocks = 1           # 1 grid step for the whole batch (use 2 on v7x)

    key = jax.random.PRNGKey(0)
    kx, kadj, kp_key = jax.random.split(key, 3)
    x = jax.random.normal(kx, (batch, in_features, node_n), dtype=jnp.float32)

    # deterministic stand-in for the user-supplied adjacency matrix
    adj = jax.random.uniform(kadj, (node, node), minval=0.0, maxval=1.0,
                             dtype=jnp.float32)
    adj = 0.5 * (adj + adj.T)

    raw = init_raw_params(kp_key, in_features, node_n, dim, adj)
    kparams = pack_kernel_params(raw, in_features, node_n, dim,
                                 batch_per_block=batch // batch_blocks)

    out = gc_block_forward(x, kparams, batch_blocks=batch_blocks)
    out = jax.block_until_ready(out)
    assert out.shape == (batch, in_features, node_n)

    ref = gc_block_reference(x, raw, node_n, dim)
    np.testing.assert_allclose(np.asarray(out), np.asarray(ref),
                               rtol=1e-4, atol=1e-4)

    print("KERNEL_OK")
</pallas_src>

<mosaic_0001>
module attributes {stable_mosaic.version = 11 : i64} {
  func.func @_gc_block_kernel(%arg0: i32, %arg1: memref<32x48xf32, #tpu.memory_space<vmem>>, %arg2: memref<48x48xf32, #tpu.memory_space<vmem>>, %arg3: memref<32x32xf32, #tpu.memory_space<vmem>>, %arg4: memref<32x48xf32, #tpu.memory_space<vmem>>, %arg5: memref<32x48xf32, #tpu.memory_space<vmem>>, %arg6: memref<48x48xf32, #tpu.memory_space<vmem>>, %arg7: memref<32x32xf32, #tpu.memory_space<vmem>>, %arg8: memref<32x48xf32, #tpu.memory_space<vmem>>, %arg9: memref<32x48xf32, #tpu.memory_space<vmem>>, %arg10: memref<32x48xf32, #tpu.memory_space<vmem>>) attributes {dimension_semantics = [#tpu.dimension_semantics<parallel>], iteration_bounds = array<i64: 1>, scalar_prefetch = 0 : i64, scratch_operands = 0 : i64, tpu.core_type = #tpu.core_type<tc>, window_params = [{transform_indices = @transform_0, window_bounds = array<i64: 32, 48>}, {pipeline_mode = #tpu.pipeline_mode<synchronous>, transform_indices = @transform_1, window_bounds = array<i64: 48, 48>}, {pipeline_mode = #tpu.pipeline_mode<synchronous>, transform_indices = @transform_2, window_bounds = array<i64: 32, 32>}, {pipeline_mode = #tpu.pipeline_mode<synchronous>, transform_indices = @transform_3, window_bounds = array<i64: 32, 48>}, {pipeline_mode = #tpu.pipeline_mode<synchronous>, transform_indices = @transform_4, window_bounds = array<i64: 32, 48>}, {pipeline_mode = #tpu.pipeline_mode<synchronous>, transform_indices = @transform_5, window_bounds = array<i64: 48, 48>}, {pipeline_mode = #tpu.pipeline_mode<synchronous>, transform_indices = @transform_6, window_bounds = array<i64: 32, 32>}, {pipeline_mode = #tpu.pipeline_mode<synchronous>, transform_indices = @transform_7, window_bounds = array<i64: 32, 48>}, {pipeline_mode = #tpu.pipeline_mode<synchronous>, transform_indices = @transform_8, window_bounds = array<i64: 32, 48>}, {transform_indices = @transform_9, window_bounds = array<i64: 32, 48>}]} {
    %c0 = arith.constant 0 : index
    %c0_0 = arith.constant 0 : index
    %0 = vector.load %arg1[%c0, %c0_0] : memref<32x48xf32, #tpu.memory_space<vmem>>, vector<32x48xf32>
    %c0_1 = arith.constant 0 : index
    %c0_2 = arith.constant 0 : index
    %1 = vector.load %arg2[%c0_1, %c0_2] : memref<48x48xf32, #tpu.memory_space<vmem>>, vector<48x48xf32>
    %cst = arith.constant dense<0.000000e+00> : vector<32x48xf32>
    %2 = tpu.matmul %0, %1, %cst {dimension_numbers = #tpu.dot_dimension_numbers<[1], [0], [0], [1], [0, 0, 1, 1], [], []>} : vector<32x48xf32>, vector<48x48xf32>, vector<32x48xf32> -> vector<32x48xf32>
    %c0_3 = arith.constant 0 : index
    %c0_4 = arith.constant 0 : index
    %3 = vector.load %arg3[%c0_3, %c0_4] : memref<32x32xf32, #tpu.memory_space<vmem>>, vector<32x32xf32>
    %cst_5 = arith.constant dense<0.000000e+00> : vector<32x48xf32>
    %4 = tpu.matmul %3, %2, %cst_5 {dimension_numbers = #tpu.dot_dimension_numbers<[1], [0], [0], [1], [0, 0, 1, 1], [], []>} : vector<32x32xf32>, vector<32x48xf32>, vector<32x48xf32> -> vector<32x48xf32>
    %c0_6 = arith.constant 0 : index
    %c0_7 = arith.constant 0 : index
    %5 = vector.load %arg4[%c0_6, %c0_7] : memref<32x48xf32, #tpu.memory_space<vmem>>, vector<32x48xf32>
    %6 = arith.mulf %4, %5 : vector<32x48xf32>
    %c0_8 = arith.constant 0 : index
    %c0_9 = arith.constant 0 : index
    %7 = vector.load %arg5[%c0_8, %c0_9] : memref<32x48xf32, #tpu.memory_space<vmem>>, vector<32x48xf32>
    %8 = arith.addf %6, %7 : vector<32x48xf32>
    %cst_10 = arith.constant 0.000000e+00 : f32
    %9 = vector.broadcast %cst_10 : f32 to vector<32x48xf32>
    %10 = arith.maximumf %8, %9 : vector<32x48xf32>
    %c0_11 = arith.constant 0 : index
    %c0_12 = arith.constant 0 : index
    %11 = vector.load %arg6[%c0_11, %c0_12] : memref<48x48xf32, #tpu.memory_space<vmem>>, vector<48x48xf32>
    %cst_13 = arith.constant dense<0.000000e+00> : vector<32x48xf32>
    %12 = tpu.matmul %10, %11, %cst_13 {dimension_numbers = #tpu.dot_dimension_numbers<[1], [0], [0], [1], [0, 0, 1, 1], [], []>} : vector<32x48xf32>, vector<48x48xf32>, vector<32x48xf32> -> vector<32x48xf32>
    %c0_14 = arith.constant 0 : index
    %c0_15 = arith.constant 0 : index
    %13 = vector.load %arg7[%c0_14, %c0_15] : memref<32x32xf32, #tpu.memory_space<vmem>>, vector<32x32xf32>
    %cst_16 = arith.constant dense<0.000000e+00> : vector<32x48xf32>
    %14 = tpu.matmul %13, %12, %cst_16 {dimension_numbers = #tpu.dot_dimension_numbers<[1], [0], [0], [1], [0, 0, 1, 1], [], []>} : vector<32x32xf32>, vector<32x48xf32>, vector<32x48xf32> -> vector<32x48xf32>
    %c0_17 = arith.constant 0 : index
    %c0_18 = arith.constant 0 : index
    %15 = vector.load %arg8[%c0_17, %c0_18] : memref<32x48xf32, #tpu.memory_space<vmem>>, vector<32x48xf32>
    %16 = arith.mulf %14, %15 : vector<32x48xf32>
    %c0_19 = arith.constant 0 : index
    %c0_20 = arith.constant 0 : index
    %17 = vector.load %arg9[%c0_19, %c0_20] : memref<32x48xf32, #tpu.memory_space<vmem>>, vector<32x48xf32>
    %18 = arith.addf %16, %17 : vector<32x48xf32>
    %cst_21 = arith.constant 0.000000e+00 : f32
    %19 = vector.broadcast %cst_21 : f32 to vector<32x48xf32>
    %20 = arith.maximumf %18, %19 : vector<32x48xf32>
    %21 = arith.addf %20, %0 : vector<32x48xf32>
    %c0_22 = arith.constant 0 : index
    %c0_23 = arith.constant 0 : index
    %22 = vector.load %arg10[%c0_22, %c0_23] : memref<32x48xf32, #tpu.memory_space<vmem>>, vector<32x48xf32>
    tpu.vector_store %arg10[%c0_22, %c0_23], %21 {strides = array<i32>} : memref<32x48xf32, #tpu.memory_space<vmem>>, vector<32x48xf32>,
    return
  }
  func.func @transform_0(%arg0: i32) -> (i32, i32) {
    %c0_i32 = arith.constant 0 : i32
    %c0_i32_0 = arith.constant 0 : i32
    return %arg0, %c0_i32 : i32, i32
  }
  func.func @transform_1(%arg0: i32) -> (i32, i32) {
    %c0_i32 = arith.constant 0 : i32
    %c0_i32_0 = arith.constant 0 : i32
    %c0_i32_1 = arith.constant 0 : i32
    return %c0_i32, %c0_i32_0 : i32, i32
  }
  func.func @transform_2(%arg0: i32) -> (i32, i32) {
    %c0_i32 = arith.constant 0 : i32
    %c0_i32_0 = arith.constant 0 : i32
    %c0_i32_1 = arith.constant 0 : i32
    return %c0_i32, %c0_i32_0 : i32, i32
  }
  func.func @transform_3(%arg0: i32) -> (i32, i32) {
    %c0_i32 = arith.constant 0 : i32
    %c0_i32_0 = arith.constant 0 : i32
    %c0_i32_1 = arith.constant 0 : i32
    return %c0_i32, %c0_i32_0 : i32, i32
  }
  func.func @transform_4(%arg0: i32) -> (i32, i32) {
    %c0_i32 = arith.constant 0 : i32
    %c0_i32_0 = arith.constant 0 : i32
    %c0_i32_1 = arith.constant 0 : i32
    return %c0_i32, %c0_i32_0 : i32, i32
  }
  func.func @transform_5(%arg0: i32) -> (i32, i32) {
    %c0_i32 = arith.constant 0 : i32
    %c0_i32_0 = arith.constant 0 : i32
    %c0_i32_1 = arith.constant 0 : i32
    return %c0_i32, %c0_i32_0 : i32, i32
  }
  func.func @transform_6(%arg0: i32) -> (i32, i32) {
    %c0_i32 = arith.constant 0 : i32
    %c0_i32_0 = arith.constant 0 : i32
    %c0_i32_1 = arith.constant 0 : i32
    return %c0_i32, %c0_i32_0 : i32, i32
  }
  func.func @transform_7(%arg0: i32) -> (i32, i32) {
    %c0_i32 = arith.constant 0 : i32
    %c0_i32_0 = arith.constant 0 : i32
    %c0_i32_1 = arith.constant 0 : i32
    return %c0_i32, %c0_i32_0 : i32, i32
  }
  func.func @transform_8(%arg0: i32) -> (i32, i32) {
    %c0_i32 = arith.constant 0 : i32
    %c0_i32_0 = arith.constant 0 : i32
    %c0_i32_1 = arith.constant 0 : i32
    return %c0_i32, %c0_i32_0 : i32, i32
  }
  func.func @transform_9(%arg0: i32) -> (i32, i32) {
    %c0_i32 = arith.constant 0 : i32
    %c0_i32_0 = arith.constant 0 : i32
    return %arg0, %c0_i32 : i32, i32
  }
}

</mosaic_0001>

<llo_original>
// kernel: tpu_custom_call.1
$region0: #{tpu_custom_call.1}
  #allocation0 [shape = 'u32[]', space=smem, size = 0x4, offset = 0x4, fixed_abs, tag = 'smem constant byte address 0x4 - core index']
  #allocation1 [shape = 'u32[144,128]{1,0:T(1,128)}', space=vmem, size = 0x12000, scoped, tag = 'internal scratch']
  %s0 = inlined_call_operand.hbm [shape: f32[32,48], index: 0, kind: input, shape index: {}]
  %s1 = inlined_call_operand.hbm [shape: f32[48,48], index: 1, kind: input, shape index: {}]
  %s2 = inlined_call_operand.hbm [shape: f32[32,32], index: 2, kind: input, shape index: {}]
  %s3 = inlined_call_operand.hbm [shape: f32[32,48], index: 3, kind: input, shape index: {}]
  %s4 = inlined_call_operand.hbm [shape: f32[32,48], index: 4, kind: input, shape index: {}]
  %s5 = inlined_call_operand.hbm [shape: f32[48,48], index: 5, kind: input, shape index: {}]
  %s6 = inlined_call_operand.hbm [shape: f32[32,32], index: 6, kind: input, shape index: {}]
  %s7 = inlined_call_operand.hbm [shape: f32[32,48], index: 7, kind: input, shape index: {}]
  %s8 = inlined_call_operand.hbm [shape: f32[32,48], index: 8, kind: input, shape index: {}]
  %s9 = inlined_call_operand.hbm [shape: f32[32,48], index: 9, kind: output, shape index: {}]
  %s10 = sld [smem:[#allocation0]]
  $region82: #{tpu_custom_call.1} parent=0
    _
  %s12 = ssub.s32 1, %s10
  %s13 = scalar_select 0, %s12, %s10
  $region1: #{tpu_custom_call.1} parent=0
    #allocation2 [shape = 'u8[16384]{0}', space=vmem, size = 0x4000, scoped, tag = 'input window, operand 0, single buffered']
    #allocation3 [shape = 's32[1]{0}', space=sflag, size = 0x4, scoped, tag = 'scoped memory for tpu_custom_call.1']
    #allocation4 [shape = 's32[1]{0}', space=sflag, size = 0x4, scoped, tag = 'scoped memory for tpu_custom_call.1']
    #allocation5 [shape = 'u8[24576]{0}', space=vmem, size = 0x6000, scoped, tag = 'input window, operand 1, single buffered']
    #allocation6 [shape = 's32[1]{0}', space=sflag, size = 0x4, scoped, tag = 'scoped memory for tpu_custom_call.1']
    #allocation7 [shape = 'u8[16384]{0}', space=vmem, size = 0x4000, scoped, tag = 'input window, operand 2, single buffered']
    #allocation8 [shape = 'u8[16384]{0}', space=vmem, size = 0x4000, scoped, tag = 'input window, operand 3, single buffered']
    #allocation9 [shape = 's32[1]{0}', space=sflag, size = 0x4, scoped, tag = 'scoped memory for tpu_custom_call.1']
    #allocation10 [shape = 'u8[16384]{0}', space=vmem, size = 0x4000, scoped, tag = 'input window, operand 4, single buffered']
    #allocation11 [shape = 'u8[24576]{0}', space=vmem, size = 0x6000, scoped, tag = 'input window, operand 5, single buffered']
    #allocation12 [shape = 's32[1]{0}', space=sflag, size = 0x4, scoped, tag = 'scoped memory for tpu_custom_call.1']
    #allocation13 [shape = 'u8[16384]{0}', space=vmem, size = 0x4000, scoped, tag = 'input window, operand 6, single buffered']
    #allocation14 [shape = 'u8[16384]{0}', space=vmem, size = 0x4000, scoped, tag = 'input window, operand 7, single buffered']
    #allocation15 [shape = 's32[1]{0}', space=sflag, size = 0x4, scoped, tag = 'scoped memory for tpu_custom_call.1']
    #allocation16 [shape = 'u8[16384]{0}', space=vmem, size = 0x4000, scoped, tag = 'input window, operand 8, single buffered']
    #allocation17 [shape = 'u8[16384]{0}', space=vmem, size = 0x4000, scoped, tag = 'output window, operand 0, single buffered']
    %14 = vsyncpa [#allocation3], 0
    %15 = vsyncpa [#allocation6], 0
    %16 = vsyncpa [#allocation9], 0
    %17 = vsyncpa [#allocation12], 0
    %18 = vsyncpa [#allocation15], 0
    %19 = vsyncpa [#allocation4], 0
    // Predicated region
    $region2: #{tpu_custom_call.1} parent=1 // pred_check
      _
    $region3: #{tpu_custom_call.1} parent=1 // pred_check_branch
      %21 = sbr.rel (0) target = $region5
    $region4: #{tpu_custom_call.1} parent=1 // pred_region
      %s23 = ssub.s32 512, 512
      %24 = vsyncadd [#allocation3], %s23
      %s25 = sshll.u32 [#allocation2], 4
      %s26 = int_to_ptr.vmem [resolvable:$true] %s25
      %31 = dma.hbm_to_vmem [thread:$0]  %s0, 512, %s26, [#allocation3], 128, 128, 8
    $region5: #{tpu_custom_call.1} parent=1 // pred_fallthru
      _
    // Predicated region
    $region6: #{tpu_custom_call.1} parent=1 // pred_check
      _
    $region7: #{tpu_custom_call.1} parent=1 // pred_check_branch
      %33 = sbr.rel (0) target = $region9
    $region8: #{tpu_custom_call.1} parent=1 // pred_region
      %s35 = ssub.s32 768, 768
      %36 = vsyncadd [#allocation6], %s35
      %s37 = sshll.u32 [#allocation5], 4
      %s38 = int_to_ptr.vmem [resolvable:$true] %s37
      %43 = dma.hbm_to_vmem [thread:$0]  %s1, 768, %s38, [#allocation6], 128, 128, 8
    $region9: #{tpu_custom_call.1} parent=1 // pred_fallthru
      _
    // Predicated region
    $region10: #{tpu_custom_call.1} parent=1 // pred_check
      _
    $region11: #{tpu_custom_call.1} parent=1 // pred_check_branch
      %45 = sbr.rel (0) target = $region13
    $region12: #{tpu_custom_call.1} parent=1 // pred_region
      %s47 = ssub.s32 512, 512
      %48 = vsyncadd [#allocation6], %s47
      %s49 = sshll.u32 [#allocation7], 4
      %s50 = int_to_ptr.vmem [resolvable:$true] %s49
      %55 = dma.hbm_to_vmem [thread:$0]  %s2, 512, %s50, [#allocation6], 128, 128, 8
    $region13: #{tpu_custom_call.1} parent=1 // pred_fallthru
      _
    // Predicated region
    $region14: #{tpu_custom_call.1} parent=1 // pred_check
      _
    $region15: #{tpu_custom_call.1} parent=1 // pred_check_branch
      %57 = sbr.rel (0) target = $region17
    $region16: #{tpu_custom_call.1} parent=1 // pred_region
      %s59 = ssub.s32 512, 512
      %60 = vsyncadd [#allocation9], %s59
      %s61 = sshll.u32 [#allocation8], 4
      %s62 = int_to_ptr.vmem [resolvable:$true] %s61
      %67 = dma.hbm_to_vmem [thread:$0]  %s3, 512, %s62, [#allocation9], 128, 128, 8
    $region17: #{tpu_custom_call.1} parent=1 // pred_fallthru
      _
    // Predicated region
    $region18: #{tpu_custom_call.1} parent=1 // pred_check
      _
    $region19: #{tpu_custom_call.1} parent=1 // pred_check_branch
      %69 = sbr.rel (0) target = $region21
    $region20: #{tpu_custom_call.1} parent=1 // pred_region
      %s71 = ssub.s32 512, 512
      %72 = vsyncadd [#allocation9], %s71
      %s73 = sshll.u32 [#allocation10], 4
      %s74 = int_to_ptr.vmem [resolvable:$true] %s73
      %79 = dma.hbm_to_vmem [thread:$0]  %s4, 512, %s74, [#allocation9], 128, 128, 8
    $region21: #{tpu_custom_call.1} parent=1 // pred_fallthru
      _
    // Predicated region
    $region22: #{tpu_custom_call.1} parent=1 // pred_check
      _
    $region23: #{tpu_custom_call.1} parent=1 // pred_check_branch
      %81 = sbr.rel (0) target = $region25
    $region24: #{tpu_custom_call.1} parent=1 // pred_region
      %s83 = ssub.s32 768, 768
      %84 = vsyncadd [#allocation12], %s83
      %s85 = sshll.u32 [#allocation11], 4
      %s86 = int_to_ptr.vmem [resolvable:$true] %s85
      %91 = dma.hbm_to_vmem [thread:$0]  %s5, 768, %s86, [#allocation12], 128, 128, 8
    $region25: #{tpu_custom_call.1} parent=1 // pred_fallthru
      _
    // Predicated region
    $region26: #{tpu_custom_call.1} parent=1 // pred_check
      _
    $region27: #{tpu_custom_call.1} parent=1 // pred_check_branch
      %93 = sbr.rel (0) target = $region29
    $region28: #{tpu_custom_call.1} parent=1 // pred_region
      %s95 = ssub.s32 512, 512
      %96 = vsyncadd [#allocation12], %s95
      %s97 = sshll.u32 [#allocation13], 4
      %s98 = int_to_ptr.vmem [resolvable:$true] %s97
      %103 = dma.hbm_to_vmem [thread:$0]  %s6, 512, %s98, [#allocation12], 128, 128, 8
    $region29: #{tpu_custom_call.1} parent=1 // pred_fallthru
      _
    // Predicated region
    $region30: #{tpu_custom_call.1} parent=1 // pred_check
      _
    $region31: #{tpu_custom_call.1} parent=1 // pred_check_branch
      %105 = sbr.rel (0) target = $region33
    $region32: #{tpu_custom_call.1} parent=1 // pred_region
      %s107 = ssub.s32 512, 512
      %108 = vsyncadd [#allocation15], %s107
      %s109 = sshll.u32 [#allocation14], 4
      %s110 = int_to_ptr.vmem [resolvable:$true] %s109
      %115 = dma.hbm_to_vmem [thread:$0]  %s7, 512, %s110, [#allocation15], 128, 128, 8
    $region33: #{tpu_custom_call.1} parent=1 // pred_fallthru
      _
    // Predicated region
    $region34: #{tpu_custom_call.1} parent=1 // pred_check
      _
    $region35: #{tpu_custom_call.1} parent=1 // pred_check_branch
      %117 = sbr.rel (0) target = $region37
    $region36: #{tpu_custom_call.1} parent=1 // pred_region
      %s119 = ssub.s32 512, 512
      %120 = vsyncadd [#allocation15], %s119
      %s121 = sshll.u32 [#allocation16], 4
      %s122 = int_to_ptr.vmem [resolvable:$true] %s121
      %127 = dma.hbm_to_vmem [thread:$0]  %s8, 512, %s122, [#allocation15], 128, 128, 8
    $region37: #{tpu_custom_call.1} parent=1 // pred_fallthru
      _
    // Predicated region
    $region38: #{tpu_custom_call.1} parent=1 // pred_check
      _
    $region39: #{tpu_custom_call.1} parent=1 // pred_check_branch
      %129 = sbr.rel (0) target = $region41
    $region40: #{tpu_custom_call.1} parent=1 // pred_region
      %130 = dma.done [#allocation3], 512
    $region41: #{tpu_custom_call.1} parent=1 // pred_fallthru
      _
    // Predicated region
    $region42: #{tpu_custom_call.1} parent=1 // pred_check
      _
    $region43: #{tpu_custom_call.1} parent=1 // pred_check_branch
      %132 = sbr.rel (0) target = $region45
    $region44: #{tpu_custom_call.1} parent=1 // pred_region
      %133 = dma.done [#allocation6], 768
    $region45: #{tpu_custom_call.1} parent=1 // pred_fallthru
      _
    // Predicated region
    $region46: #{tpu_custom_call.1} parent=1 // pred_check
      _
    $region47: #{tpu_custom_call.1} parent=1 // pred_check_branch
      %135 = sbr.rel (0) target = $region49
    $region48: #{tpu_custom_call.1} parent=1 // pred_region
      %136 = dma.done [#allocation6], 512
    $region49: #{tpu_custom_call.1} parent=1 // pred_fallthru
      _
    // Predicated region
    $region50: #{tpu_custom_call.1} parent=1 // pred_check
      _
    $region51: #{tpu_custom_call.1} parent=1 // pred_check_branch
      %138 = sbr.rel (0) target = $region53
    $region52: #{tpu_custom_call.1} parent=1 // pred_region
      %139 = dma.done [#allocation9], 512
    $region53: #{tpu_custom_call.1} parent=1 // pred_fallthru
      _
    // Predicated region
    $region54: #{tpu_custom_call.1} parent=1 // pred_check
      _
    $region55: #{tpu_custom_call.1} parent=1 // pred_check_branch
      %141 = sbr.rel (0) target = $region57
    $region56: #{tpu_custom_call.1} parent=1 // pred_region
      %142 = dma.done [#allocation9], 512
    $region57: #{tpu_custom_call.1} parent=1 // pred_fallthru
      _
    // Predicated region
    $region58: #{tpu_custom_call.1} parent=1 // pred_check
      _
    $region59: #{tpu_custom_call.1} parent=1 // pred_check_branch
      %144 = sbr.rel (0) target = $region61
    $region60: #{tpu_custom_call.1} parent=1 // pred_region
      %145 = dma.done [#allocation12], 768
    $region61: #{tpu_custom_call.1} parent=1 // pred_fallthru
      _
    // Predicated region
    $region62: #{tpu_custom_call.1} parent=1 // pred_check
      _
    $region63: #{tpu_custom_call.1} parent=1 // pred_check_branch
      %147 = sbr.rel (0) target = $region65
    $region64: #{tpu_custom_call.1} parent=1 // pred_region
      %148 = dma.done [#allocation12], 512
    $region65: #{tpu_custom_call.1} parent=1 // pred_fallthru
      _
    // Predicated region
    $region66: #{tpu_custom_call.1} parent=1 // pred_check
      _
    $region67: #{tpu_custom_call.1} parent=1 // pred_check_branch
      %150 = sbr.rel (0) target = $region69
    $region68: #{tpu_custom_call.1} parent=1 // pred_region
      %151 = dma.done [#allocation15], 512
    $region69: #{tpu_custom_call.1} parent=1 // pred_fallthru
      _
    // Predicated region
    $region70: #{tpu_custom_call.1} parent=1 // pred_check
      _
    $region71: #{tpu_custom_call.1} parent=1 // pred_check_branch
      %153 = sbr.rel (0) target = $region73
    $region72: #{tpu_custom_call.1} parent=1 // pred_region
      %154 = dma.done [#allocation15], 512
    $region73: #{tpu_custom_call.1} parent=1 // pred_fallthru
      _
    %v155 = vld [vmem:[#allocation2] sm:$0xff]
    %v156 = vld [vmem:[#allocation2 + $0x8] sm:$0xff]
    %v157 = vld [vmem:[#allocation2 + $0x10] sm:$0xff]
    %v158 = vld [vmem:[#allocation2 + $0x18] sm:$0xff]
    %v159 = vld [vmem:[#allocation5] sm:$0xff]
    %v160 = vld [vmem:[#allocation5 + $0x8] sm:$0xff]
    %v161 = vld [vmem:[#allocation5 + $0x10] sm:$0xff]
    %v162 = vld [vmem:[#allocation5 + $0x18] sm:$0xff]
    %v163 = vld [vmem:[#allocation5 + $0x20] sm:$0xff]
    %v164 = vld [vmem:[#allocation5 + $0x28] sm:$0xff]
    %vm165 = vcmask 392192
    %v167 = vsel %vm165, %v155, 0
    %v170 = vsel %vm165, %v156, 0
    %v173 = vsel %vm165, %v157, 0
    %v176 = vsel %vm165, %v158, 0
    %178 = vmatprep.subr.mxu0 0.0
    %179 = vmatpush1.msra.mxu0 %v159
    %180 = vmatprep.subr.mxu0 0.0
    %181 = vmatpush1.msra.mxu0 %v160
    %182 = vmatprep.subr.mxu0 0.0
    %183 = vmatpush1.msra.mxu0 %v161
    %184 = vmatprep.subr.mxu0 0.0
    %185 = vmatpush1.msra.mxu0 %v162
    %186 = vmatprep.subr.mxu0 0.0
    %187 = vmatpush1.msra.mxu0 %v163
    %188 = vmatprep.subr.mxu0 0.0
    %189 = vmatpush1.msra.mxu0 %v164
    %190 = vmatprep.subr.mxu0 0.0
    %191 = vmatpush1.msra.mxu0 0.0
    %192 = vmatprep.subr.mxu0 0.0
    %193 = vmatpush1.msra.mxu0 0.0
    %194 = vmatprep.subr.mxu0 0.0
    %195 = vmatpush1.msra.mxu0 0.0
    %196 = vmatprep.subr.mxu0 0.0
    %197 = vmatpush1.msra.mxu0 0.0
    %198 = vmatprep.subr.mxu0 0.0
    %199 = vmatpush1.msra.mxu0 0.0
    %200 = vmatprep.subr.mxu0 0.0
    %201 = vmatpush1.msra.mxu0 0.0
    %202 = vmatprep.subr.mxu0 0.0
    %203 = vmatpush1.msra.mxu0 0.0
    %204 = vmatprep.subr.mxu0 0.0
    %205 = vmatpush1.msra.mxu0 0.0
    %206 = vmatprep.subr.mxu0 0.0
    %207 = vmatpush1.msra.mxu0 0.0
    %208 = vmatprep.subr.mxu0 0.0
    %209 = vmatpush1.msra.mxu0 0.0
    %210 = vmatprep.subr.mxu0 0.0
    %211 = vmatpush1.msra.mxu0 0.0
    %212 = vmatprep.subr.mxu0 0.0
    %213 = vmatpush1.msra.mxu0 0.0
    %214 = vmatprep.subr.mxu0 0.0
    %215 = vmatpush1.msra.mxu0 0.0
    %216 = vmatprep.subr.mxu0 0.0
    %217 = vmatpush1.msra.mxu0 0.0
    %218 = vmatprep.subr.mxu0 0.0
    %219 = vmatpush1.msra.mxu0 0.0
    %220 = vmatprep.subr.mxu0 0.0
    %221 = vmatpush1.msra.mxu0 0.0
    %222 = vmatprep.subr.mxu0 0.0
    %223 = vmatpush1.msra.mxu0 0.0
    %224 = vmatprep.subr.mxu0 0.0
    %225 = vmatpush1.msra.mxu0 0.0
    %226 = vmatprep.subr.mxu0 0.0
    %227 = vmatpush1.msra.mxu0 0.0
    %228 = vmatprep.subr.mxu0 0.0
    %229 = vmatpush1.msra.mxu0 0.0
    %230 = vmatprep.subr.mxu0 0.0
    %231 = vmatpush1.msra.mxu0 0.0
    %232 = vmatprep.subr.mxu0 0.0
    %233 = vmatpush1.msra.mxu0 0.0
    %234 = vmatprep.subr.mxu0 0.0
    %235 = vmatpush1.msra.mxu0 0.0
    %236 = vmatprep.subr.mxu0 0.0
    %237 = vmatpush1.msra.mxu0 0.0
    %238 = vmatprep.subr.mxu0 0.0
    %239 = vmatpush1.msra.mxu0 0.0
    %240 = vmatprep.subr.mxu0 0.0
    %241 = vmatpush1.msra.mxu0 0.0
    %242 = vmatprep.mubr.f32.mxu0 0.0
    %243 = vmatmul.mubr.f32.gmra.mrb[0].mxu0 %v167
    %v244 = vpop.f32.mrb[0].mxu0
    %v245 = vadd.f32 0.0, %v244
    %v246 = vpop.f32.mrb[0].mxu0
    %247 = vmatprep.mubr.f32.mxu0 0.0
    %248 = vmatmul.mubr.f32.gmra.mrb[0].mxu0 %v170
    %v249 = vpop.f32.mrb[0].mxu0
    %v250 = vadd.f32 0.0, %v249
    %v251 = vpop.f32.mrb[0].mxu0
    %252 = vmatprep.mubr.f32.mxu0 0.0
    %253 = vmatmul.mubr.f32.gmra.mrb[0].mxu0 %v173
    %v254 = vpop.f32.mrb[0].mxu0
    %v255 = vadd.f32 0.0, %v254
    %v256 = vpop.f32.mrb[0].mxu0
    %257 = vmatprep.mubr.f32.mxu0 0.0
    %258 = vmatmul.mubr.f32.gmra.mrb[0].mxu0 %v176
    %v259 = vpop.f32.mrb[0].mxu0
    %v260 = vadd.f32 0.0, %v259
    %v261 = vpop.f32.mrb[0].mxu0
    %262 = vdwg.mxu0
    %v263 = vld [vmem:[#allocation7] sm:$0xff]
    %v264 = vld [vmem:[#allocation7 + $0x8] sm:$0xff]
    %v265 = vld [vmem:[#allocation7 + $0x10] sm:$0xff]
    %v266 = vld [vmem:[#allocation7 + $0x18] sm:$0xff]
    %vm267 = vcmask 261120
    %v269 = vsel %vm267, %v263, 0
    %v272 = vsel %vm267, %v264, 0
    %v275 = vsel %vm267, %v265, 0
    %v278 = vsel %vm267, %v266, 0
    %280 = vmatprep.subr.mxu0 0.0
    %281 = vmatpush1.msra.mxu0 %v245
    %282 = vmatprep.subr.mxu0 0.0
    %283 = vmatpush1.msra.mxu0 %v250
    %284 = vmatprep.subr.mxu0 0.0
    %285 = vmatpush1.msra.mxu0 %v255
    %286 = vmatprep.subr.mxu0 0.0
    %287 = vmatpush1.msra.mxu0 %v260
    %288 = vmatprep.subr.mxu0 0.0
    %289 = vmatpush1.msra.mxu0 0.0
    %290 = vmatprep.subr.mxu0 0.0
    %291 = vmatpush1.msra.mxu0 0.0
    %292 = vmatprep.subr.mxu0 0.0
    %293 = vmatpush1.msra.mxu0 0.0
    %294 = vmatprep.subr.mxu0 0.0
    %295 = vmatpush1.msra.mxu0 0.0
    %296 = vmatprep.subr.mxu0 0.0
    %297 = vmatpush1.msra.mxu0 0.0
    %298 = vmatprep.subr.mxu0 0.0
    %299 = vmatpush1.msra.mxu0 0.0
    %300 = vmatprep.subr.mxu0 0.0
    %301 = vmatpush1.msra.mxu0 0.0
    %302 = vmatprep.subr.mxu0 0.0
    %303 = vmatpush1.msra.mxu0 0.0
    %304 = vmatprep.subr.mxu0 0.0
    %305 = vmatpush1.msra.mxu0 0.0
    %306 = vmatprep.subr.mxu0 0.0
    %307 = vmatpush1.msra.mxu0 0.0
    %308 = vmatprep.subr.mxu0 0.0
    %309 = vmatpush1.msra.mxu0 0.0
    %310 = vmatprep.subr.mxu0 0.0
    %311 = vmatpush1.msra.mxu0 0.0
    %312 = vmatprep.subr.mxu0 0.0
    %313 = vmatpush1.msra.mxu0 0.0
    %314 = vmatprep.subr.mxu0 0.0
    %315 = vmatpush1.msra.mxu0 0.0
    %316 = vmatprep.subr.mxu0 0.0
    %317 = vmatpush1.msra.mxu0 0.0
    %318 = vmatprep.subr.mxu0 0.0
    %319 = vmatpush1.msra.mxu0 0.0
    %320 = vmatprep.subr.mxu0 0.0
    %321 = vmatpush1.msra.mxu0 0.0
    %322 = vmatprep.subr.mxu0 0.0
    %323 = vmatpush1.msra.mxu0 0.0
    %324 = vmatprep.subr.mxu0 0.0
    %325 = vmatpush1.msra.mxu0 0.0
    %326 = vmatprep.subr.mxu0 0.0
    %327 = vmatpush1.msra.mxu0 0.0
    %328 = vmatprep.subr.mxu0 0.0
    %329 = vmatpush1.msra.mxu0 0.0
    %330 = vmatprep.subr.mxu0 0.0
    %331 = vmatpush1.msra.mxu0 0.0
    %332 = vmatprep.subr.mxu0 0.0
    %333 = vmatpush1.msra.mxu0 0.0
    %334 = vmatprep.subr.mxu0 0.0
    %335 = vmatpush1.msra.mxu0 0.0
    %336 = vmatprep.subr.mxu0 0.0
    %337 = vmatpush1.msra.mxu0 0.0
    %338 = vmatprep.subr.mxu0 0.0
    %339 = vmatpush1.msra.mxu0 0.0
    %340 = vmatprep.subr.mxu0 0.0
    %341 = vmatpush1.msra.mxu0 0.0
    %342 = vmatprep.subr.mxu0 0.0
    %343 = vmatpush1.msra.mxu0 0.0
    %344 = vmatprep.mubr.f32.mxu0 0.0
    %345 = vmatmul.mubr.f32.gmra.mrb[0].mxu0 %v269
    %v346 = vpop.f32.mrb[0].mxu0
    %v347 = vadd.f32 0.0, %v346
    %v348 = vpop.f32.mrb[0].mxu0
    %349 = vmatprep.mubr.f32.mxu0 0.0
    %350 = vmatmul.mubr.f32.gmra.mrb[0].mxu0 %v272
    %v351 = vpop.f32.mrb[0].mxu0
    %v352 = vadd.f32 0.0, %v351
    %v353 = vpop.f32.mrb[0].mxu0
    %354 = vmatprep.mubr.f32.mxu0 0.0
    %355 = vmatmul.mubr.f32.gmra.mrb[0].mxu0 %v275
    %v356 = vpop.f32.mrb[0].mxu0
    %v357 = vadd.f32 0.0, %v356
    %v358 = vpop.f32.mrb[0].mxu0
    %359 = vmatprep.mubr.f32.mxu0 0.0
    %360 = vmatmul.mubr.f32.gmra.mrb[0].mxu0 %v278
    %v361 = vpop.f32.mrb[0].mxu0
    %v362 = vadd.f32 0.0, %v361
    %v363 = vpop.f32.mrb[0].mxu0
    %364 = vdwg.mxu0
    %v365 = vld [vmem:[#allocation8] sm:$0xff]
    %v366 = vld [vmem:[#allocation8 + $0x8] sm:$0xff]
    %v367 = vld [vmem:[#allocation8 + $0x10] sm:$0xff]
    %v368 = vld [vmem:[#allocation8 + $0x18] sm:$0xff]
    %v369 = vmul.f32 %v347, %v365
    %v370 = vmul.f32 %v352, %v366
    %v371 = vmul.f32 %v357, %v367
    %v372 = vmul.f32 %v362, %v368
    %v373 = vld [vmem:[#allocation10] sm:$0xff]
    %v374 = vld [vmem:[#allocation10 + $0x8] sm:$0xff]
    %v375 = vld [vmem:[#allocation10 + $0x10] sm:$0xff]
    %v376 = vld [vmem:[#allocation10 + $0x18] sm:$0xff]
    %v377 = vadd.f32 %v369, %v373
    %v378 = vadd.f32 %v370, %v374
    %v379 = vadd.f32 %v371, %v375
    %v380 = vadd.f32 %v372, %v376
    %v381 = vmax.f32 %v377, 0.0
    %v382 = vmax.f32 %v378, 0.0
    %v383 = vmax.f32 %v379, 0.0
    %v384 = vmax.f32 %v380, 0.0
    %v385 = vld [vmem:[#allocation11] sm:$0xff]
    %v386 = vld [vmem:[#allocation11 + $0x8] sm:$0xff]
    %v387 = vld [vmem:[#allocation11 + $0x10] sm:$0xff]
    %v388 = vld [vmem:[#allocation11 + $0x18] sm:$0xff]
    %v389 = vld [vmem:[#allocation11 + $0x20] sm:$0xff]
    %v390 = vld [vmem:[#allocation11 + $0x28] sm:$0xff]
    %v392 = vsel %vm165, %v381, 0
    %v395 = vsel %vm165, %v382, 0
    %v398 = vsel %vm165, %v383, 0
    %v401 = vsel %vm165, %v384, 0
    %403 = vmatprep.subr.mxu0 0.0
    %404 = vmatpush1.msra.mxu0 %v385
    %405 = vmatprep.subr.mxu0 0.0
    %406 = vmatpush1.msra.mxu0 %v386
    %407 = vmatprep.subr.mxu0 0.0
    %408 = vmatpush1.msra.mxu0 %v387
    %409 = vmatprep.subr.mxu0 0.0
    %410 = vmatpush1.msra.mxu0 %v388
    %411 = vmatprep.subr.mxu0 0.0
    %412 = vmatpush1.msra.mxu0 %v389
    %413 = vmatprep.subr.mxu0 0.0
    %414 = vmatpush1.msra.mxu0 %v390
    %415 = vmatprep.subr.mxu0 0.0
    %416 = vmatpush1.msra.mxu0 0.0
    %417 = vmatprep.subr.mxu0 0.0
    %418 = vmatpush1.msra.mxu0 0.0
    %419 = vmatprep.subr.mxu0 0.0
    %420 = vmatpush1.msra.mxu0 0.0
    %421 = vmatprep.subr.mxu0 0.0
    %422 = vmatpush1.msra.mxu0 0.0
    %423 = vmatprep.subr.mxu0 0.0
    %424 = vmatpush1.msra.mxu0 0.0
    %425 = vmatprep.subr.mxu0 0.0
    %426 = vmatpush1.msra.mxu0 0.0
    %427 = vmatprep.subr.mxu0 0.0
    %428 = vmatpush1.msra.mxu0 0.0
    %429 = vmatprep.subr.mxu0 0.0
    %430 = vmatpush1.msra.mxu0 0.0
    %431 = vmatprep.subr.mxu0 0.0
    %432 = vmatpush1.msra.mxu0 0.0
    %433 = vmatprep.subr.mxu0 0.0
    %434 = vmatpush1.msra.mxu0 0.0
    %435 = vmatprep.subr.mxu0 0.0
    %436 = vmatpush1.msra.mxu0 0.0
    %437 = vmatprep.subr.mxu0 0.0
    %438 = vmatpush1.msra.mxu0 0.0
    %439 = vmatprep.subr.mxu0 0.0
    %440 = vmatpush1.msra.mxu0 0.0
    %441 = vmatprep.subr.mxu0 0.0
    %442 = vmatpush1.msra.mxu0 0.0
    %443 = vmatprep.subr.mxu0 0.0
    %444 = vmatpush1.msra.mxu0 0.0
    %445 = vmatprep.subr.mxu0 0.0
    %446 = vmatpush1.msra.mxu0 0.0
    %447 = vmatprep.subr.mxu0 0.0
    %448 = vmatpush1.msra.mxu0 0.0
    %449 = vmatprep.subr.mxu0 0.0
    %450 = vmatpush1.msra.mxu0 0.0
    %451 = vmatprep.subr.mxu0 0.0
    %452 = vmatpush1.msra.mxu0 0.0
    %453 = vmatprep.subr.mxu0 0.0
    %454 = vmatpush1.msra.mxu0 0.0
    %455 = vmatprep.subr.mxu0 0.0
    %456 = vmatpush1.msra.mxu0 0.0
    %457 = vmatprep.subr.mxu0 0.0
    %458 = vmatpush1.msra.mxu0 0.0
    %459 = vmatprep.subr.mxu0 0.0
    %460 = vmatpush1.msra.mxu0 0.0
    %461 = vmatprep.subr.mxu0 0.0
    %462 = vmatpush1.msra.mxu0 0.0
    %463 = vmatprep.subr.mxu0 0.0
    %464 = vmatpush1.msra.mxu0 0.0
    %465 = vmatprep.subr.mxu0 0.0
    %466 = vmatpush1.msra.mxu0 0.0
    %467 = vmatprep.mubr.f32.mxu0 0.0
    %468 = vmatmul.mubr.f32.gmra.mrb[0].mxu0 %v392
    %v469 = vpop.f32.mrb[0].mxu0
    %v470 = vadd.f32 0.0, %v469
    %v471 = vpop.f32.mrb[0].mxu0
    %472 = vmatprep.mubr.f32.mxu0 0.0
    %473 = vmatmul.mubr.f32.gmra.mrb[0].mxu0 %v395
    %v474 = vpop.f32.mrb[0].mxu0
    %v475 = vadd.f32 0.0, %v474
    %v476 = vpop.f32.mrb[0].mxu0
    %477 = vmatprep.mubr.f32.mxu0 0.0
    %478 = vmatmul.mubr.f32.gmra.mrb[0].mxu0 %v398
    %v479 = vpop.f32.mrb[0].mxu0
    %v480 = vadd.f32 0.0, %v479
    %v481 = vpop.f32.mrb[0].mxu0
    %482 = vmatprep.mubr.f32.mxu0 0.0
    %483 = vmatmul.mubr.f32.gmra.mrb[0].mxu0 %v401
    %v484 = vpop.f32.mrb[0].mxu0
    %v485 = vadd.f32 0.0, %v484
    %v486 = vpop.f32.mrb[0].mxu0
    %487 = vdwg.mxu0
    %v488 = vld [vmem:[#allocation13] sm:$0xff]
    %v489 = vld [vmem:[#allocation13 + $0x8] sm:$0xff]
    %v490 = vld [vmem:[#allocation13 + $0x10] sm:$0xff]
    %v491 = vld [vmem:[#allocation13 + $0x18] sm:$0xff]
    %v493 = vsel %vm267, %v488, 0
    %v496 = vsel %vm267, %v489, 0
    %v499 = vsel %vm267, %v490, 0
    %v502 = vsel %vm267, %v491, 0
    %504 = vmatprep.subr.mxu0 0.0
    %505 = vmatpush1.msra.mxu0 %v470
    %506 = vmatprep.subr.mxu0 0.0
    %507 = vmatpush1.msra.mxu0 %v475
    %508 = vmatprep.subr.mxu0 0.0
    %509 = vmatpush1.msra.mxu0 %v480
    %510 = vmatprep.subr.mxu0 0.0
    %511 = vmatpush1.msra.mxu0 %v485
    %512 = vmatprep.subr.mxu0 0.0
    %513 = vmatpush1.msra.mxu0 0.0
    %514 = vmatprep.subr.mxu0 0.0
    %515 = vmatpush1.msra.mxu0 0.0
    %516 = vmatprep.subr.mxu0 0.0
    %517 = vmatpush1.msra.mxu0 0.0
    %518 = vmatprep.subr.mxu0 0.0
    %519 = vmatpush1.msra.mxu0 0.0
    %520 = vmatprep.subr.mxu0 0.0
    %521 = vmatpush1.msra.mxu0 0.0
    %522 = vmatprep.subr.mxu0 0.0
    %523 = vmatpush1.msra.mxu0 0.0
    %524 = vmatprep.subr.mxu0 0.0
    %525 = vmatpush1.msra.mxu0 0.0
    %526 = vmatprep.subr.mxu0 0.0
    %527 = vmatpush1.msra.mxu0 0.0
    %528 = vmatprep.subr.mxu0 0.0
    %529 = vmatpush1.msra.mxu0 0.0
    %530 = vmatprep.subr.mxu0 0.0
    %531 = vmatpush1.msra.mxu0 0.0
    %532 = vmatprep.subr.mxu0 0.0
    %533 = vmatpush1.msra.mxu0 0.0
    %534 = vmatprep.subr.mxu0 0.0
    %535 = vmatpush1.msra.mxu0 0.0
    %536 = vmatprep.subr.mxu0 0.0
    %537 = vmatpush1.msra.mxu0 0.0
    %538 = vmatprep.subr.mxu0 0.0
    %539 = vmatpush1.msra.mxu0 0.0
    %540 = vmatprep.subr.mxu0 0.0
    %541 = vmatpush1.msra.mxu0 0.0
    %542 = vmatprep.subr.mxu0 0.0
    %543 = vmatpush1.msra.mxu0 0.0
    %544 = vmatprep.subr.mxu0 0.0
    %545 = vmatpush1.msra.mxu0 0.0
    %546 = vmatprep.subr.mxu0 0.0
    %547 = vmatpush1.msra.mxu0 0.0
    %548 = vmatprep.subr.mxu0 0.0
    %549 = vmatpush1.msra.mxu0 0.0
    %550 = vmatprep.subr.mxu0 0.0
    %551 = vmatpush1.msra.mxu0 0.0
    %552 = vmatprep.subr.mxu0 0.0
    %553 = vmatpush1.msra.mxu0 0.0
    %554 = vmatprep.subr.mxu0 0.0
    %555 = vmatpush1.msra.mxu0 0.0
    %556 = vmatprep.subr.mxu0 0.0
    %557 = vmatpush1.msra.mxu0 0.0
    %558 = vmatprep.subr.mxu0 0.0
    %559 = vmatpush1.msra.mxu0 0.0
    %560 = vmatprep.subr.mxu0 0.0
    %561 = vmatpush1.msra.mxu0 0.0
    %562 = vmatprep.subr.mxu0 0.0
    %563 = vmatpush1.msra.mxu0 0.0
    %564 = vmatprep.subr.mxu0 0.0
    %565 = vmatpush1.msra.mxu0 0.0
    %566 = vmatprep.subr.mxu0 0.0
    %567 = vmatpush1.msra.mxu0 0.0
    %568 = vmatprep.mubr.f32.mxu0 0.0
    %569 = vmatmul.mubr.f32.gmra.mrb[0].mxu0 %v493
    %v570 = vpop.f32.mrb[0].mxu0
    %v571 = vadd.f32 0.0, %v570
    %v572 = vpop.f32.mrb[0].mxu0
    %573 = vmatprep.mubr.f32.mxu0 0.0
    %574 = vmatmul.mubr.f32.gmra.mrb[0].mxu0 %v496
    %v575 = vpop.f32.mrb[0].mxu0
    %v576 = vadd.f32 0.0, %v575
    %v577 = vpop.f32.mrb[0].mxu0
    %578 = vmatprep.mubr.f32.mxu0 0.0
    %579 = vmatmul.mubr.f32.gmra.mrb[0].mxu0 %v499
    %v580 = vpop.f32.mrb[0].mxu0
    %v581 = vadd.f32 0.0, %v580
    %v582 = vpop.f32.mrb[0].mxu0
    %583 = vmatprep.mubr.f32.mxu0 0.0
    %584 = vmatmul.mubr.f32.gmra.mrb[0].mxu0 %v502
    %v585 = vpop.f32.mrb[0].mxu0
    %v586 = vadd.f32 0.0, %v585
    %v587 = vpop.f32.mrb[0].mxu0
    %588 = vdwg.mxu0
    %v589 = vld [vmem:[#allocation14] sm:$0xff]
    %v590 = vld [vmem:[#allocation14 + $0x8] sm:$0xff]
    %v591 = vld [vmem:[#allocation14 + $0x10] sm:$0xff]
    %v592 = vld [vmem:[#allocation14 + $0x18] sm:$0xff]
    %v593 = vmul.f32 %v571, %v589
    %v594 = vmul.f32 %v576, %v590
    %v595 = vmul.f32 %v581, %v591
    %v596 = vmul.f32 %v586, %v592
    %v597 = vld [vmem:[#allocation16] sm:$0xff]
    %v598 = vld [vmem:[#allocation16 + $0x8] sm:$0xff]
    %v599 = vld [vmem:[#allocation16 + $0x10] sm:$0xff]
    %v600 = vld [vmem:[#allocation16 + $0x18] sm:$0xff]
    %v601 = vadd.f32 %v593, %v597
    %v602 = vadd.f32 %v594, %v598
    %v603 = vadd.f32 %v595, %v599
    %v604 = vadd.f32 %v596, %v600
    %v605 = vmax.f32 %v601, 0.0
    %v606 = vmax.f32 %v602, 0.0
    %v607 = vmax.f32 %v603, 0.0
    %v608 = vmax.f32 %v604, 0.0
    %v609 = vadd.f32 %v605, %v155
    %v610 = vadd.f32 %v606, %v156
    %v611 = vadd.f32 %v607, %v157
    %v612 = vadd.f32 %v608, %v158
    %613 = vst.msk [vmem:[#allocation17] sm:$0xff] %vm165, %v609
    %614 = vst.msk [vmem:[#allocation17 + $0x8] sm:$0xff] %vm165, %v610
    %615 = vst.msk [vmem:[#allocation17 + $0x10] sm:$0xff] %vm165, %v611
    %616 = vst.msk [vmem:[#allocation17 + $0x18] sm:$0xff] %vm165, %v612
    // Predicated region
    $region74: #{tpu_custom_call.1} parent=1 // pred_check
      _
    $region75: #{tpu_custom_call.1} parent=1 // pred_check_branch
      %618 = sbr.rel (0) target = $region77
    $region76: #{tpu_custom_call.1} parent=1 // pred_region
      %s620 = ssub.s32 512, 512
      %621 = vsyncadd [#allocation4], %s620
      %s622 = sshll.u32 [#allocation17], 4
      %s623 = int_to_ptr.vmem [resolvable:$true] %s622
      %628 = dma.vmem_to_hbm [thread:$0]  %s623, 512, %s9, [#allocation4], 128, 128, 8
    $region77: #{tpu_custom_call.1} parent=1 // pred_fallthru
      _
    // Predicated region
    $region78: #{tpu_custom_call.1} parent=1 // pred_check
      _
    $region79: #{tpu_custom_call.1} parent=1 // pred_check_branch
      %630 = sbr.rel (0) target = $region81
    $region80: #{tpu_custom_call.1} parent=1 // pred_region
      %631 = dma.done [#allocation4], 512
    $region81: #{tpu_custom_call.1} parent=1 // pred_fallthru
      _
    %632 = vsyncpa [#allocation3], 1
    %633 = vsyncpa [#allocation6], 1
    %634 = vsyncpa [#allocation9], 1
    %635 = vsyncpa [#allocation12], 1
    %636 = vsyncpa [#allocation15], 1
    %637 = vsyncpa [#allocation4], 1

</llo_original>
